<compile_context>
chip_gen: v6e
topology: v6e:2x2x1
jax: 0.10.0
libtpu: 0.0.40
codegen_flags: <defaults>
</compile_context>

<pallas_src>
import jax
import jax.numpy as jnp
from jax import lax
from jax.experimental import pallas as pl
from jax.experimental.pallas import tpu as pltpu


def rnn_only_kernel(x_ref, wih_ref, whh_ref, b_ref, h0_ref, wout_ref,
                    bout_ref, out_ref):
    """Tanh-RNN over time + linear head, fully VMEM/vreg resident.

    x_ref   : (T*B, I)  time-major rows, row t*B + b == (t, b)
    wih_ref : (I, H)    whh_ref : (H, H)    b_ref : (1, H)  (= b_ih + b_hh)
    h0_ref  : (B, H)
    wout_ref: (O, H)    bout_ref: (O, 1)
    out_ref : (O, T*B)  lane-dense head output; wrapper transposes to (T*B, O)
    """
    TB = x_ref.shape[0]
    B = h0_ref.shape[0]
    T = TB // B  # static Python int

    # ---- (1) Bulk input projection, hoisted off the serial chain. ---------
    # One (T*B, I) @ (I, H) MXU pass + bias; result stays a live value.
    pre_all = (jnp.dot(x_ref[...], wih_ref[...],
                       preferred_element_type=jnp.float32)
               + b_ref[...])                                   # (T*B, H)

    whh = whh_ref[...]                                         # hoist weight load
    h = h0_ref[...]                                            # (B, H)

    # ---- (2) Serial recurrence kept entirely in vregs. --------------------
    # Static Python unroll (T is small & static): each step slices pre_all
    # with compile-time constants and does one dependent matmul + tanh.
    hs = []
    for t in range(T):
        pre_t = pre_all[t * B:(t + 1) * B, :]                  # (B, H), static slice
        h = jnp.tanh(pre_t + jnp.dot(h, whh,
                                     preferred_element_type=jnp.float32))
        hs.append(h)                                           # record h_t (post-tanh)

    # Row order t*B + b matches PyTorch's out.reshape(-1, H).
    h_all = jnp.concatenate(hs, axis=0)                        # (T*B, H)

    # ---- (3) Lane-dense output head, single store. -------------------------
    # (O, H) x (T*B, H) contracted over H  ->  (O, T*B)
    y = lax.dot_general(wout_ref[...], h_all,
                        (((1,), (1,)), ((), ())),
                        preferred_element_type=jnp.float32) + bout_ref[...]
    out_ref[...] = y.astype(out_ref.dtype)


def prepare_params(w_ih, w_hh, b_ih, b_hh, w_out, b_out):
    """One-time parameter prep (transposes / bias combine) outside the jit."""
    H = w_hh.shape[0]
    O = w_out.shape[0]
    return (jnp.transpose(w_ih),           # (I, H)
            jnp.transpose(w_hh),           # (H, H)
            (b_ih + b_hh).reshape(1, H),   # (1, H)
            w_out,                         # (O, H)  -- kept un-transposed
            b_out.reshape(O, 1))           # (O, 1)


@jax.jit
def rnn_only_forward(x, wih_t, whh_t, b_comb, h0, wout, bout2):
    """
    x      : (T, B, I) float32
    wih_t  : (I, H)   whh_t : (H, H)   b_comb : (1, H)
    h0     : (B, H)
    wout   : (O, H)   bout2 : (O, 1)
    returns: (T*B, O)  -- same as PyTorch `self.linear(out.reshape(-1, H))`

    NOTE: with these tiny shapes, per-call overhead dominates; if this sits
    inside a larger model, fuse the neighbouring ops into this jit region.
    """
    T, B, I = x.shape
    H = whh_t.shape[0]
    O = wout.shape[0]

    x2 = x.reshape(T * B, I)  # contiguous reshape (free), row t*B+b == (t, b)

    full = lambda shp: pl.BlockSpec(shp, lambda: (0,) * len(shp),
                                    memory_space=pltpu.MemorySpace.VMEM)

    out_lane = pl.pallas_call(
        rnn_only_kernel,
        out_shape=jax.ShapeDtypeStruct((O, T * B), jnp.float32),
        in_specs=[
            full((T * B, I)),
            full((I, H)),
            full((H, H)),
            full((1, H)),
            full((B, H)),
            full((O, H)),
            full((O, 1)),
        ],
        out_specs=full((O, T * B)),
    )(x2, wih_t, whh_t, b_comb, h0, wout, bout2)

    # (O, T*B) -> (T*B, O); for O == 1 this is a free reshape.
    return jnp.transpose(out_lane)


def _init_params(key, input_size, hidden_size, output_size):
    """Deterministic PyTorch-style uniform(-1/sqrt(H), 1/sqrt(H)) init."""
    ks = jax.random.split(key, 6)
    k = 1.0 / jnp.sqrt(hidden_size)
    u = lambda kk, shp: jax.random.uniform(kk, shp, jnp.float32, -k, k)
    w_ih = u(ks[0], (hidden_size, input_size))
    w_hh = u(ks[1], (hidden_size, hidden_size))
    b_ih = u(ks[2], (hidden_size,))
    b_hh = u(ks[3], (hidden_size,))
    w_out = u(ks[4], (output_size, hidden_size))
    b_out = u(ks[5], (output_size,))
    return w_ih, w_hh, b_ih, b_hh, w_out, b_out


def _reference_forward(x, w_ih, w_hh, b_ih, b_hh, h0, w_out, b_out):
    """Pure-JAX reference of the PyTorch forward (sanity check)."""
    T, B, _ = x.shape
    H = w_hh.shape[0]
    h = h0
    outs = []
    for t in range(T):
        h = jnp.tanh(x[t] @ w_ih.T + b_ih + h @ w_hh.T + b_hh)
        outs.append(h)
    out = jnp.stack(outs, axis=0).reshape(-1, H)
    return out @ w_out.T + b_out


if __name__ == "__main__":
    # Small shapes consistent with the module's (seq, batch, feature) forward.
    seq_len, batch_size = 8, 2
    input_size, hidden_size, output_size = 4, 32, 1

    key = jax.random.PRNGKey(0)
    kx, kp = jax.random.split(key)
    x = jax.random.normal(kx, (seq_len, batch_size, input_size), jnp.float32)
    w_ih, w_hh, b_ih, b_hh, w_out, b_out = _init_params(
        kp, input_size, hidden_size, output_size)
    h0 = jnp.zeros((batch_size, hidden_size), jnp.float32)  # self.hidden init

    # One-time parameter prep (outside the jitted forward).
    wih_t, whh_t, b_comb, wout_p, bout2 = prepare_params(
        w_ih, w_hh, b_ih, b_hh, w_out, b_out)

    out = rnn_only_forward(x, wih_t, whh_t, b_comb, h0, wout_p, bout2)
    out = jax.block_until_ready(out)

    ref = _reference_forward(x, w_ih, w_hh, b_ih, b_hh, h0, w_out, b_out)
    assert out.shape == (seq_len * batch_size, output_size), out.shape
    assert jnp.allclose(out, ref, atol=1e-5, rtol=1e-5), (
        float(jnp.max(jnp.abs(out - ref))))

    # TODO(synk): PyTorch's forward also mutates self.hidden; the final hidden
    # state is not returned here (pass/update h0 externally if needed).
    print("KERNEL_OK")
</pallas_src>

<mosaic_0001>
module attributes {stable_mosaic.version = 11 : i64} {
  func.func @rnn_only_kernel(%arg0: memref<16x4xf32, #tpu.memory_space<vmem>>, %arg1: memref<4x32xf32, #tpu.memory_space<vmem>>, %arg2: memref<32x32xf32, #tpu.memory_space<vmem>>, %arg3: memref<1x32xf32, #tpu.memory_space<vmem>>, %arg4: memref<2x32xf32, #tpu.memory_space<vmem>>, %arg5: memref<1x32xf32, #tpu.memory_space<vmem>>, %arg6: memref<1x1xf32, #tpu.memory_space<vmem>>, %arg7: memref<1x16xf32, #tpu.memory_space<vmem>>) attributes {dimension_semantics = [], scalar_prefetch = 0 : i64, scratch_operands = 0 : i64, tpu.core_type = #tpu.core_type<tc>} {
    %c0 = arith.constant 0 : index
    %c0_0 = arith.constant 0 : index
    %0 = vector.load %arg0[%c0, %c0_0] : memref<16x4xf32, #tpu.memory_space<vmem>>, vector<16x4xf32>
    %c0_1 = arith.constant 0 : index
    %c0_2 = arith.constant 0 : index
    %1 = vector.load %arg1[%c0_1, %c0_2] : memref<4x32xf32, #tpu.memory_space<vmem>>, vector<4x32xf32>
    %cst = arith.constant dense<0.000000e+00> : vector<16x32xf32>
    %2 = tpu.matmul %0, %1, %cst {dimension_numbers = #tpu.dot_dimension_numbers<[1], [0], [0], [1], [0, 0, 1, 1], [], []>} : vector<16x4xf32>, vector<4x32xf32>, vector<16x32xf32> -> vector<16x32xf32>
    %c0_3 = arith.constant 0 : index
    %c0_4 = arith.constant 0 : index
    %3 = vector.load %arg3[%c0_3, %c0_4] : memref<1x32xf32, #tpu.memory_space<vmem>>, vector<1x32xf32>
    %4 = vector.broadcast %3 : vector<1x32xf32> to vector<16x32xf32>
    %5 = arith.addf %2, %4 : vector<16x32xf32>
    %c0_5 = arith.constant 0 : index
    %c0_6 = arith.constant 0 : index
    %6 = vector.load %arg2[%c0_5, %c0_6] : memref<32x32xf32, #tpu.memory_space<vmem>>, vector<32x32xf32>
    %c0_7 = arith.constant 0 : index
    %c0_8 = arith.constant 0 : index
    %7 = vector.load %arg4[%c0_7, %c0_8] : memref<2x32xf32, #tpu.memory_space<vmem>>, vector<2x32xf32>
    %8 = vector.extract_strided_slice %5 {offsets = [0, 0], sizes = [2, 32], strides = [1, 1]} : vector<16x32xf32> to vector<2x32xf32>
    %cst_9 = arith.constant dense<0.000000e+00> : vector<2x32xf32>
    %9 = tpu.matmul %7, %6, %cst_9 {dimension_numbers = #tpu.dot_dimension_numbers<[1], [0], [0], [1], [0, 0, 1, 1], [], []>} : vector<2x32xf32>, vector<32x32xf32>, vector<2x32xf32> -> vector<2x32xf32>
    %10 = arith.addf %8, %9 : vector<2x32xf32>
    %11 = math.tanh %10 : vector<2x32xf32>
    %12 = vector.extract_strided_slice %5 {offsets = [2, 0], sizes = [2, 32], strides = [1, 1]} : vector<16x32xf32> to vector<2x32xf32>
    %cst_10 = arith.constant dense<0.000000e+00> : vector<2x32xf32>
    %13 = tpu.matmul %11, %6, %cst_10 {dimension_numbers = #tpu.dot_dimension_numbers<[1], [0], [0], [1], [0, 0, 1, 1], [], []>} : vector<2x32xf32>, vector<32x32xf32>, vector<2x32xf32> -> vector<2x32xf32>
    %14 = arith.addf %12, %13 : vector<2x32xf32>
    %15 = math.tanh %14 : vector<2x32xf32>
    %16 = vector.extract_strided_slice %5 {offsets = [4, 0], sizes = [2, 32], strides = [1, 1]} : vector<16x32xf32> to vector<2x32xf32>
    %cst_11 = arith.constant dense<0.000000e+00> : vector<2x32xf32>
    %17 = tpu.matmul %15, %6, %cst_11 {dimension_numbers = #tpu.dot_dimension_numbers<[1], [0], [0], [1], [0, 0, 1, 1], [], []>} : vector<2x32xf32>, vector<32x32xf32>, vector<2x32xf32> -> vector<2x32xf32>
    %18 = arith.addf %16, %17 : vector<2x32xf32>
    %19 = math.tanh %18 : vector<2x32xf32>
    %20 = vector.extract_strided_slice %5 {offsets = [6, 0], sizes = [2, 32], strides = [1, 1]} : vector<16x32xf32> to vector<2x32xf32>
    %cst_12 = arith.constant dense<0.000000e+00> : vector<2x32xf32>
    %21 = tpu.matmul %19, %6, %cst_12 {dimension_numbers = #tpu.dot_dimension_numbers<[1], [0], [0], [1], [0, 0, 1, 1], [], []>} : vector<2x32xf32>, vector<32x32xf32>, vector<2x32xf32> -> vector<2x32xf32>
    %22 = arith.addf %20, %21 : vector<2x32xf32>
    %23 = math.tanh %22 : vector<2x32xf32>
    %24 = vector.extract_strided_slice %5 {offsets = [8, 0], sizes = [2, 32], strides = [1, 1]} : vector<16x32xf32> to vector<2x32xf32>
    %cst_13 = arith.constant dense<0.000000e+00> : vector<2x32xf32>
    %25 = tpu.matmul %23, %6, %cst_13 {dimension_numbers = #tpu.dot_dimension_numbers<[1], [0], [0], [1], [0, 0, 1, 1], [], []>} : vector<2x32xf32>, vector<32x32xf32>, vector<2x32xf32> -> vector<2x32xf32>
    %26 = arith.addf %24, %25 : vector<2x32xf32>
    %27 = math.tanh %26 : vector<2x32xf32>
    %28 = vector.extract_strided_slice %5 {offsets = [10, 0], sizes = [2, 32], strides = [1, 1]} : vector<16x32xf32> to vector<2x32xf32>
    %cst_14 = arith.constant dense<0.000000e+00> : vector<2x32xf32>
    %29 = tpu.matmul %27, %6, %cst_14 {dimension_numbers = #tpu.dot_dimension_numbers<[1], [0], [0], [1], [0, 0, 1, 1], [], []>} : vector<2x32xf32>, vector<32x32xf32>, vector<2x32xf32> -> vector<2x32xf32>
    %30 = arith.addf %28, %29 : vector<2x32xf32>
    %31 = math.tanh %30 : vector<2x32xf32>
    %32 = vector.extract_strided_slice %5 {offsets = [12, 0], sizes = [2, 32], strides = [1, 1]} : vector<16x32xf32> to vector<2x32xf32>
    %cst_15 = arith.constant dense<0.000000e+00> : vector<2x32xf32>
    %33 = tpu.matmul %31, %6, %cst_15 {dimension_numbers = #tpu.dot_dimension_numbers<[1], [0], [0], [1], [0, 0, 1, 1], [], []>} : vector<2x32xf32>, vector<32x32xf32>, vector<2x32xf32> -> vector<2x32xf32>
    %34 = arith.addf %32, %33 : vector<2x32xf32>
    %35 = math.tanh %34 : vector<2x32xf32>
    %36 = vector.extract_strided_slice %5 {offsets = [14, 0], sizes = [2, 32], strides = [1, 1]} : vector<16x32xf32> to vector<2x32xf32>
    %cst_16 = arith.constant dense<0.000000e+00> : vector<2x32xf32>
    %37 = tpu.matmul %35, %6, %cst_16 {dimension_numbers = #tpu.dot_dimension_numbers<[1], [0], [0], [1], [0, 0, 1, 1], [], []>} : vector<2x32xf32>, vector<32x32xf32>, vector<2x32xf32> -> vector<2x32xf32>
    %38 = arith.addf %36, %37 : vector<2x32xf32>
    %39 = math.tanh %38 : vector<2x32xf32>
    %40 = tpu.concatenate %11, %15, %19, %23, %27, %31, %35, %39 in 0 : vector<2x32xf32>, vector<2x32xf32>, vector<2x32xf32>, vector<2x32xf32>, vector<2x32xf32>, vector<2x32xf32>, vector<2x32xf32>, vector<2x32xf32> -> vector<16x32xf32>
    %c0_17 = arith.constant 0 : index
    %c0_18 = arith.constant 0 : index
    %41 = vector.load %arg5[%c0_17, %c0_18] : memref<1x32xf32, #tpu.memory_space<vmem>>, vector<1x32xf32>
    %cst_19 = arith.constant dense<0.000000e+00> : vector<1x16xf32>
    %42 = tpu.matmul %41, %40, %cst_19 {dimension_numbers = #tpu.dot_dimension_numbers<[1], [1], [0], [0], [0, 0, 1, 0], [], []>} : vector<1x32xf32>, vector<16x32xf32>, vector<1x16xf32> -> vector<1x16xf32>
    %c0_20 = arith.constant 0 : index
    %c0_21 = arith.constant 0 : index
    %43 = vector.load %arg6[%c0_20, %c0_21] : memref<1x1xf32, #tpu.memory_space<vmem>>, vector<1x1xf32>
    %44 = vector.broadcast %43 : vector<1x1xf32> to vector<1x16xf32>
    %45 = arith.addf %42, %44 : vector<1x16xf32>
    %c0_22 = arith.constant 0 : index
    %c0_23 = arith.constant 0 : index
    %46 = vector.load %arg7[%c0_22, %c0_23] : memref<1x16xf32, #tpu.memory_space<vmem>>, vector<1x16xf32>
    tpu.vector_store %arg7[%c0_22, %c0_23], %45 {strides = array<i32>} : memref<1x16xf32, #tpu.memory_space<vmem>>, vector<1x16xf32>,
    return
  }
}

</mosaic_0001>

<llo_original>
// kernel: rnn_only_forward.1
$region0: #{rnn_only_forward.1}
  #allocation0 [shape = 'u32[]', space=smem, size = 0x4, offset = 0x4, fixed_abs, tag = 'smem constant byte address 0x4 - core index']
  #allocation1 [shape = 'u32[144,128]{1,0:T(1,128)}', space=vmem, size = 0x12000, scoped, tag = 'internal scratch']
  #allocation2 [shape = 'f32[1,1]{1,0:T(1,128)S(1)}', space=vmem, size = 0x200, scoped, tag = 'scoped memory for rnn_only_forward.1']
  %s0 = inlined_call_operand.vmem [shape: f32[16,4], index: 0, kind: input, shape index: {}]
  %s1 = inlined_call_operand.vmem [shape: f32[4,32], index: 1, kind: input, shape index: {}]
  %s2 = inlined_call_operand.hbm [shape: f32[32,32], index: 2, kind: input, shape index: {}]
  %s3 = inlined_call_operand.vmem [shape: f32[1,32], index: 3, kind: input, shape index: {}]
  %s4 = inlined_call_operand.vmem [shape: f32[2,32], index: 4, kind: input, shape index: {}]
  %s5 = inlined_call_operand.vmem [shape: f32[1,32], index: 5, kind: input, shape index: {}]
  %s6 = inlined_call_operand.<no memory space> [shape: f32[1,1], index: 6, kind: input, shape index: {}]
  %s7 = inlined_call_operand.hbm [shape: f32[1,16], index: 7, kind: output, shape index: {}]
  %s8 = sld [smem:[#allocation0]]
  $region42: #{rnn_only_forward.1} parent=0
    _
  %s10 = ssub.s32 1, %s8
  %s11 = scalar_select 0, %s10, %s8
  %v12 = vstv %s6
  %13 = vst [vmem:[#allocation2] sm:$0x1] %v12
  $region1: #{rnn_only_forward.1} parent=0
    #allocation3 [shape = 'u8[16384]{0}', space=vmem, size = 0x4000, scoped, tag = 'input window, operand 2, single buffered']
    #allocation4 [shape = 's32[1]{0}', space=sflag, size = 0x4, scoped, tag = 'scoped memory for rnn_only_forward.1']
    #allocation5 [shape = 's32[1]{0}', space=sflag, size = 0x4, scoped, tag = 'scoped memory for rnn_only_forward.1']
    #allocation6 [shape = 'u8[512]{0}', space=vmem, size = 0x400, scoped, tag = 'output window, operand 0, single buffered']
    %14 = vsyncpa [#allocation4], 0
    %15 = vsyncpa [#allocation5], 0
    // Predicated region
    $region2: #{rnn_only_forward.1} parent=1 // pred_check
      _
    $region3: #{rnn_only_forward.1} parent=1 // pred_check_branch
      %17 = sbr.rel (0) target = $region5
    $region4: #{rnn_only_forward.1} parent=1 // pred_region
      _
    $region5: #{rnn_only_forward.1} parent=1 // pred_fallthru
      _
    // Predicated region
    $region6: #{rnn_only_forward.1} parent=1 // pred_check
      _
    $region7: #{rnn_only_forward.1} parent=1 // pred_check_branch
      %19 = sbr.rel (0) target = $region9
    $region8: #{rnn_only_forward.1} parent=1 // pred_region
      _
    $region9: #{rnn_only_forward.1} parent=1 // pred_fallthru
      _
    // Predicated region
    $region10: #{rnn_only_forward.1} parent=1 // pred_check
      _
    $region11: #{rnn_only_forward.1} parent=1 // pred_check_branch
      %21 = sbr.rel (0) target = $region13
    $region12: #{rnn_only_forward.1} parent=1 // pred_region
      %s23 = ssub.s32 512, 512
      %24 = vsyncadd [#allocation4], %s23
      %s25 = sshll.u32 [#allocation3], 4
      %s26 = int_to_ptr.vmem [resolvable:$true] %s25
      %31 = dma.hbm_to_vmem [thread:$0]  %s2, 512, %s26, [#allocation4], 128, 128, 8
    $region13: #{rnn_only_forward.1} parent=1 // pred_fallthru
      _
    // Predicated region
    $region14: #{rnn_only_forward.1} parent=1 // pred_check
      _
    $region15: #{rnn_only_forward.1} parent=1 // pred_check_branch
      %33 = sbr.rel (0) target = $region17
    $region16: #{rnn_only_forward.1} parent=1 // pred_region
      _
    $region17: #{rnn_only_forward.1} parent=1 // pred_fallthru
      _
    // Predicated region
    $region18: #{rnn_only_forward.1} parent=1 // pred_check
      _
    $region19: #{rnn_only_forward.1} parent=1 // pred_check_branch
      %35 = sbr.rel (0) target = $region21
    $region20: #{rnn_only_forward.1} parent=1 // pred_region
      _
    $region21: #{rnn_only_forward.1} parent=1 // pred_fallthru
      _
    // Predicated region
    $region22: #{rnn_only_forward.1} parent=1 // pred_check
      _
    $region23: #{rnn_only_forward.1} parent=1 // pred_check_branch
      %37 = sbr.rel (0) target = $region25
    $region24: #{rnn_only_forward.1} parent=1 // pred_region
      _
    $region25: #{rnn_only_forward.1} parent=1 // pred_fallthru
      _
    // Predicated region
    $region26: #{rnn_only_forward.1} parent=1 // pred_check
      _
    $region27: #{rnn_only_forward.1} parent=1 // pred_check_branch
      %39 = sbr.rel (0) target = $region29
    $region28: #{rnn_only_forward.1} parent=1 // pred_region
      _
    $region29: #{rnn_only_forward.1} parent=1 // pred_fallthru
      _
    // Predicated region
    $region30: #{rnn_only_forward.1} parent=1 // pred_check
      _
    $region31: #{rnn_only_forward.1} parent=1 // pred_check_branch
      %41 = sbr.rel (0) target = $region33
    $region32: #{rnn_only_forward.1} parent=1 // pred_region
      %42 = dma.done [#allocation4], 512
    $region33: #{rnn_only_forward.1} parent=1 // pred_fallthru
      _
    %v43 = vld [vmem:[%s0] sm:$0xff]
    %v44 = vld [vmem:[%s0 + $0x8] sm:$0xff]
    %v45 = vld [vmem:[%s1] sm:$0xf]
    %v46 = vld [vmem:[%s3] sm:$0x1]
    %v48 = vlaneseq
    %v49 = vshrl.u32 %v48, 7
    %v50 = vsub.s32 0, %v49
    %v51 = vrot.slane %v46, %v50
    %vm53 = vcmask 31744
    %v55 = vsel %vm53, %v43, 0
    %v58 = vsel %vm53, %v44, 0
    %vm60 = vcmask 1043456
    %v62 = vsel %vm60, %v45, 0
    %64 = vmatprep.subr.mxu0 0.0
    %65 = vmatpush1.msra.mxu0 0.0
    %66 = vmatprep.subr.mxu0 0.0
    %67 = vmatpush1.msra.mxu0 0.0
    %68 = vmatprep.subr.mxu0 0.0
    %69 = vmatpush1.msra.mxu0 0.0
    %70 = vmatprep.subr.mxu0 0.0
    %71 = vmatpush1.msra.mxu0 0.0
    %72 = vmatprep.subr.mxu0 0.0
    %73 = vmatpush1.msra.mxu0 0.0
    %74 = vmatprep.subr.mxu0 0.0
    %75 = vmatpush1.msra.mxu0 0.0
    %76 = vmatprep.subr.mxu0 0.0
    %77 = vmatpush1.msra.mxu0 0.0
    %78 = vmatprep.subr.mxu0 0.0
    %79 = vmatpush1.msra.mxu0 0.0
    %80 = vmatprep.subr.mxu0 0.0
    %81 = vmatpush1.msra.mxu0 0.0
    %82 = vmatprep.subr.mxu0 0.0
    %83 = vmatpush1.msra.mxu0 0.0
    %84 = vmatprep.subr.mxu0 0.0
    %85 = vmatpush1.msra.mxu0 0.0
    %86 = vmatprep.subr.mxu0 0.0
    %87 = vmatpush1.msra.mxu0 0.0
    %88 = vmatprep.subr.mxu0 0.0
    %89 = vmatpush1.msra.mxu0 0.0
    %90 = vmatprep.subr.mxu0 0.0
    %91 = vmatpush1.msra.mxu0 0.0
    %92 = vmatprep.subr.mxu0 0.0
    %93 = vmatpush1.msra.mxu0 0.0
    %94 = vmatprep.subr.mxu0 0.0
    %95 = vmatpush1.msra.mxu0 %v62
    %96 = vmatprep.subr.mxu0 0.0
    %97 = vmatpush2.msra.mxu0 0.0
    %98 = vmatprep.subr.mxu0 0.0
    %99 = vmatpush2.msra.mxu0 0.0
    %100 = vmatprep.subr.mxu0 0.0
    %101 = vmatpush2.msra.mxu0 0.0
    %102 = vmatprep.subr.mxu0 0.0
    %103 = vmatpush2.msra.mxu0 0.0
    %104 = vmatprep.subr.mxu0 0.0
    %105 = vmatpush2.msra.mxu0 0.0
    %106 = vmatprep.subr.mxu0 0.0
    %107 = vmatpush2.msra.mxu0 0.0
    %108 = vmatprep.subr.mxu0 0.0
    %109 = vmatpush2.msra.mxu0 0.0
    %110 = vmatprep.subr.mxu0 0.0
    %111 = vmatpush2.msra.mxu0 0.0
    %112 = vmatprep.subr.mxu0 0.0
    %113 = vmatpush2.msra.mxu0 0.0
    %114 = vmatprep.subr.mxu0 0.0
    %115 = vmatpush2.msra.mxu0 0.0
    %116 = vmatprep.subr.mxu0 0.0
    %117 = vmatpush2.msra.mxu0 0.0
    %118 = vmatprep.subr.mxu0 0.0
    %119 = vmatpush2.msra.mxu0 0.0
    %120 = vmatprep.subr.mxu0 0.0
    %121 = vmatpush2.msra.mxu0 0.0
    %122 = vmatprep.subr.mxu0 0.0
    %123 = vmatpush2.msra.mxu0 0.0
    %124 = vmatprep.subr.mxu0 0.0
    %125 = vmatpush2.msra.mxu0 0.0
    %126 = vmatprep.subr.mxu0 0.0
    %127 = vmatpush2.msra.mxu0 0.0
    %128 = vmatprep.mubr.f32.mxu0 0.0
    %129 = vmatmul.mubr.f32.gmra.mxu0 %v55
    %v130 = vpop.f32.mrf.mxu0
    %v131 = vadd.f32 %v51, %v130
    %v132 = vpop.f32.mrf.mxu0
    %133 = vmatprep.mubr.f32.mxu0 0.0
    %134 = vmatmul.mubr.f32.gmra.mxu0 %v58
    %v135 = vpop.f32.mrf.mxu0
    %v136 = vadd.f32 %v51, %v135
    %v137 = vpop.f32.mrf.mxu0
    %138 = vdwg.mxu0
    %v139 = vld [vmem:[#allocation3] sm:$0xff]
    %v140 = vld [vmem:[#allocation3 + $0x8] sm:$0xff]
    %v141 = vld [vmem:[#allocation3 + $0x10] sm:$0xff]
    %v142 = vld [vmem:[#allocation3 + $0x18] sm:$0xff]
    %v143 = vld [vmem:[%s4] sm:$0x3]
    %vm144 = vcmask 261120
    %v146 = vsel %vm144, %v143, 0
    %148 = vmatprep.subr.mxu0 0.0
    %149 = vmatpush1.msra.mxu0 0.0
    %150 = vmatprep.subr.mxu0 0.0
    %151 = vmatpush1.msra.mxu0 0.0
    %152 = vmatprep.subr.mxu0 0.0
    %153 = vmatpush1.msra.mxu0 0.0
    %154 = vmatprep.subr.mxu0 0.0
    %155 = vmatpush1.msra.mxu0 0.0
    %156 = vmatprep.subr.mxu0 0.0
    %157 = vmatpush1.msra.mxu0 0.0
    %158 = vmatprep.subr.mxu0 0.0
    %159 = vmatpush1.msra.mxu0 0.0
    %160 = vmatprep.subr.mxu0 0.0
    %161 = vmatpush1.msra.mxu0 0.0
    %162 = vmatprep.subr.mxu0 0.0
    %163 = vmatpush1.msra.mxu0 0.0
    %164 = vmatprep.subr.mxu0 0.0
    %165 = vmatpush1.msra.mxu0 0.0
    %166 = vmatprep.subr.mxu0 0.0
    %167 = vmatpush1.msra.mxu0 0.0
    %168 = vmatprep.subr.mxu0 0.0
    %169 = vmatpush1.msra.mxu0 0.0
    %170 = vmatprep.subr.mxu0 0.0
    %171 = vmatpush1.msra.mxu0 0.0
    %172 = vmatprep.subr.mxu0 0.0
    %173 = vmatpush1.msra.mxu0 %v142
    %174 = vmatprep.subr.mxu0 0.0
    %175 = vmatpush1.msra.mxu0 %v141
    %176 = vmatprep.subr.mxu0 0.0
    %177 = vmatpush1.msra.mxu0 %v140
    %178 = vmatprep.subr.mxu0 0.0
    %179 = vmatpush1.msra.mxu0 %v139
    %180 = vmatprep.subr.mxu0 0.0
    %181 = vmatpush2.msra.mxu0 0.0
    %182 = vmatprep.subr.mxu0 0.0
    %183 = vmatpush2.msra.mxu0 0.0
    %184 = vmatprep.subr.mxu0 0.0
    %185 = vmatpush2.msra.mxu0 0.0
    %186 = vmatprep.subr.mxu0 0.0
    %187 = vmatpush2.msra.mxu0 0.0
    %188 = vmatprep.subr.mxu0 0.0
    %189 = vmatpush2.msra.mxu0 0.0
    %190 = vmatprep.subr.mxu0 0.0
    %191 = vmatpush2.msra.mxu0 0.0
    %192 = vmatprep.subr.mxu0 0.0
    %193 = vmatpush2.msra.mxu0 0.0
    %194 = vmatprep.subr.mxu0 0.0
    %195 = vmatpush2.msra.mxu0 0.0
    %196 = vmatprep.subr.mxu0 0.0
    %197 = vmatpush2.msra.mxu0 0.0
    %198 = vmatprep.subr.mxu0 0.0
    %199 = vmatpush2.msra.mxu0 0.0
    %200 = vmatprep.subr.mxu0 0.0
    %201 = vmatpush2.msra.mxu0 0.0
    %202 = vmatprep.subr.mxu0 0.0
    %203 = vmatpush2.msra.mxu0 0.0
    %204 = vmatprep.subr.mxu0 0.0
    %205 = vmatpush2.msra.mxu0 0.0
    %206 = vmatprep.subr.mxu0 0.0
    %207 = vmatpush2.msra.mxu0 0.0
    %208 = vmatprep.subr.mxu0 0.0
    %209 = vmatpush2.msra.mxu0 0.0
    %210 = vmatprep.subr.mxu0 0.0
    %211 = vmatpush2.msra.mxu0 0.0
    %212 = vmatprep.mubr.f32.mxu0 0.0
    %213 = vmatmul.mubr.f32.gmra.mxu0 %v146
    %v214 = vpop.f32.mrf.mxu0
    %v215 = vadd.f32 0.0, %v214
    %v216 = vpop.f32.mrf.mxu0
    %217 = vdwg.mxu0
    %v218 = vadd.f32 %v131, %v215
    %v219 = vtanh.pop %v218
    %v221 = vsel %vm144, %v219, 0
    %223 = vmatprep.subr.mxu0 0.0
    %224 = vmatpush1.msra.mxu0 0.0
    %225 = vmatprep.subr.mxu0 0.0
    %226 = vmatpush1.msra.mxu0 0.0
    %227 = vmatprep.subr.mxu0 0.0
    %228 = vmatpush1.msra.mxu0 0.0
    %229 = vmatprep.subr.mxu0 0.0
    %230 = vmatpush1.msra.mxu0 0.0
    %231 = vmatprep.subr.mxu0 0.0
    %232 = vmatpush1.msra.mxu0 0.0
    %233 = vmatprep.subr.mxu0 0.0
    %234 = vmatpush1.msra.mxu0 0.0
    %235 = vmatprep.subr.mxu0 0.0
    %236 = vmatpush1.msra.mxu0 0.0
    %237 = vmatprep.subr.mxu0 0.0
    %238 = vmatpush1.msra.mxu0 0.0
    %239 = vmatprep.subr.mxu0 0.0
    %240 = vmatpush1.msra.mxu0 0.0
    %241 = vmatprep.subr.mxu0 0.0
    %242 = vmatpush1.msra.mxu0 0.0
    %243 = vmatprep.subr.mxu0 0.0
    %244 = vmatpush1.msra.mxu0 0.0
    %245 = vmatprep.subr.mxu0 0.0
    %246 = vmatpush1.msra.mxu0 0.0
    %247 = vmatprep.subr.mxu0 0.0
    %248 = vmatpush1.msra.mxu0 %v142
    %249 = vmatprep.subr.mxu0 0.0
    %250 = vmatpush1.msra.mxu0 %v141
    %251 = vmatprep.subr.mxu0 0.0
    %252 = vmatpush1.msra.mxu0 %v140
    %253 = vmatprep.subr.mxu0 0.0
    %254 = vmatpush1.msra.mxu0 %v139
    %255 = vmatprep.subr.mxu0 0.0
    %256 = vmatpush2.msra.mxu0 0.0
    %257 = vmatprep.subr.mxu0 0.0
    %258 = vmatpush2.msra.mxu0 0.0
    %259 = vmatprep.subr.mxu0 0.0
    %260 = vmatpush2.msra.mxu0 0.0
    %261 = vmatprep.subr.mxu0 0.0
    %262 = vmatpush2.msra.mxu0 0.0
    %263 = vmatprep.subr.mxu0 0.0
    %264 = vmatpush2.msra.mxu0 0.0
    %265 = vmatprep.subr.mxu0 0.0
    %266 = vmatpush2.msra.mxu0 0.0
    %267 = vmatprep.subr.mxu0 0.0
    %268 = vmatpush2.msra.mxu0 0.0
    %269 = vmatprep.subr.mxu0 0.0
    %270 = vmatpush2.msra.mxu0 0.0
    %271 = vmatprep.subr.mxu0 0.0
    %272 = vmatpush2.msra.mxu0 0.0
    %273 = vmatprep.subr.mxu0 0.0
    %274 = vmatpush2.msra.mxu0 0.0
    %275 = vmatprep.subr.mxu0 0.0
    %276 = vmatpush2.msra.mxu0 0.0
    %277 = vmatprep.subr.mxu0 0.0
    %278 = vmatpush2.msra.mxu0 0.0
    %279 = vmatprep.subr.mxu0 0.0
    %280 = vmatpush2.msra.mxu0 0.0
    %281 = vmatprep.subr.mxu0 0.0
    %282 = vmatpush2.msra.mxu0 0.0
    %283 = vmatprep.subr.mxu0 0.0
    %284 = vmatpush2.msra.mxu0 0.0
    %285 = vmatprep.subr.mxu0 0.0
    %286 = vmatpush2.msra.mxu0 0.0
    %287 = vmatprep.mubr.f32.mxu0 0.0
    %288 = vmatmul.mubr.f32.gmra.mxu0 %v221
    %v289 = vpop.f32.mrf.mxu0
    %v290 = vadd.f32 0.0, %v289
    %v291 = vpop.f32.mrf.mxu0
    %292 = vdwg.mxu0
    %v294 = vrot.slane %v290, 6
    %v296 = vadd.f32 %v131, %v294
    %v297 = vtanh.pop %v296
    %v299 = vrot.slane %v297, 2
    %v300 = vsel %vm144, %v299, 0
    %302 = vmatprep.subr.mxu0 0.0
    %303 = vmatpush1.msra.mxu0 0.0
    %304 = vmatprep.subr.mxu0 0.0
    %305 = vmatpush1.msra.mxu0 0.0
    %306 = vmatprep.subr.mxu0 0.0
    %307 = vmatpush1.msra.mxu0 0.0
    %308 = vmatprep.subr.mxu0 0.0
    %309 = vmatpush1.msra.mxu0 0.0
    %310 = vmatprep.subr.mxu0 0.0
    %311 = vmatpush1.msra.mxu0 0.0
    %312 = vmatprep.subr.mxu0 0.0
    %313 = vmatpush1.msra.mxu0 0.0
    %314 = vmatprep.subr.mxu0 0.0
    %315 = vmatpush1.msra.mxu0 0.0
    %316 = vmatprep.subr.mxu0 0.0
    %317 = vmatpush1.msra.mxu0 0.0
    %318 = vmatprep.subr.mxu0 0.0
    %319 = vmatpush1.msra.mxu0 0.0
    %320 = vmatprep.subr.mxu0 0.0
    %321 = vmatpush1.msra.mxu0 0.0
    %322 = vmatprep.subr.mxu0 0.0
    %323 = vmatpush1.msra.mxu0 0.0
    %324 = vmatprep.subr.mxu0 0.0
    %325 = vmatpush1.msra.mxu0 0.0
    %326 = vmatprep.subr.mxu0 0.0
    %327 = vmatpush1.msra.mxu0 %v142
    %328 = vmatprep.subr.mxu0 0.0
    %329 = vmatpush1.msra.mxu0 %v141
    %330 = vmatprep.subr.mxu0 0.0
    %331 = vmatpush1.msra.mxu0 %v140
    %332 = vmatprep.subr.mxu0 0.0
    %333 = vmatpush1.msra.mxu0 %v139
    %334 = vmatprep.subr.mxu0 0.0
    %335 = vmatpush2.msra.mxu0 0.0
    %336 = vmatprep.subr.mxu0 0.0
    %337 = vmatpush2.msra.mxu0 0.0
    %338 = vmatprep.subr.mxu0 0.0
    %339 = vmatpush2.msra.mxu0 0.0
    %340 = vmatprep.subr.mxu0 0.0
    %341 = vmatpush2.msra.mxu0 0.0
    %342 = vmatprep.subr.mxu0 0.0
    %343 = vmatpush2.msra.mxu0 0.0
    %344 = vmatprep.subr.mxu0 0.0
    %345 = vmatpush2.msra.mxu0 0.0
    %346 = vmatprep.subr.mxu0 0.0
    %347 = vmatpush2.msra.mxu0 0.0
    %348 = vmatprep.subr.mxu0 0.0
    %349 = vmatpush2.msra.mxu0 0.0
    %350 = vmatprep.subr.mxu0 0.0
    %351 = vmatpush2.msra.mxu0 0.0
    %352 = vmatprep.subr.mxu0 0.0
    %353 = vmatpush2.msra.mxu0 0.0
    %354 = vmatprep.subr.mxu0 0.0
    %355 = vmatpush2.msra.mxu0 0.0
    %356 = vmatprep.subr.mxu0 0.0
    %357 = vmatpush2.msra.mxu0 0.0
    %358 = vmatprep.subr.mxu0 0.0
    %359 = vmatpush2.msra.mxu0 0.0
    %360 = vmatprep.subr.mxu0 0.0
    %361 = vmatpush2.msra.mxu0 0.0
    %362 = vmatprep.subr.mxu0 0.0
    %363 = vmatpush2.msra.mxu0 0.0
    %364 = vmatprep.subr.mxu0 0.0
    %365 = vmatpush2.msra.mxu0 0.0
    %366 = vmatprep.mubr.f32.mxu0 0.0
    %367 = vmatmul.mubr.f32.gmra.mxu0 %v300
    %v368 = vpop.f32.mrf.mxu0
    %v369 = vadd.f32 0.0, %v368
    %v370 = vpop.f32.mrf.mxu0
    %371 = vdwg.mxu0
    %v373 = vrot.slane %v369, 4
    %v375 = vadd.f32 %v131, %v373
    %v376 = vtanh.pop %v375
    %v378 = vrot.slane %v376, 4
    %v379 = vsel %vm144, %v378, 0
    %381 = vmatprep.subr.mxu0 0.0
    %382 = vmatpush1.msra.mxu0 0.0
    %383 = vmatprep.subr.mxu0 0.0
    %384 = vmatpush1.msra.mxu0 0.0
    %385 = vmatprep.subr.mxu0 0.0
    %386 = vmatpush1.msra.mxu0 0.0
    %387 = vmatprep.subr.mxu0 0.0
    %388 = vmatpush1.msra.mxu0 0.0
    %389 = vmatprep.subr.mxu0 0.0
    %390 = vmatpush1.msra.mxu0 0.0
    %391 = vmatprep.subr.mxu0 0.0
    %392 = vmatpush1.msra.mxu0 0.0
    %393 = vmatprep.subr.mxu0 0.0
    %394 = vmatpush1.msra.mxu0 0.0
    %395 = vmatprep.subr.mxu0 0.0
    %396 = vmatpush1.msra.mxu0 0.0
    %397 = vmatprep.subr.mxu0 0.0
    %398 = vmatpush1.msra.mxu0 0.0
    %399 = vmatprep.subr.mxu0 0.0
    %400 = vmatpush1.msra.mxu0 0.0
    %401 = vmatprep.subr.mxu0 0.0
    %402 = vmatpush1.msra.mxu0 0.0
    %403 = vmatprep.subr.mxu0 0.0
    %404 = vmatpush1.msra.mxu0 0.0
    %405 = vmatprep.subr.mxu0 0.0
    %406 = vmatpush1.msra.mxu0 %v142
    %407 = vmatprep.subr.mxu0 0.0
    %408 = vmatpush1.msra.mxu0 %v141
    %409 = vmatprep.subr.mxu0 0.0
    %410 = vmatpush1.msra.mxu0 %v140
    %411 = vmatprep.subr.mxu0 0.0
    %412 = vmatpush1.msra.mxu0 %v139
    %413 = vmatprep.subr.mxu0 0.0
    %414 = vmatpush2.msra.mxu0 0.0
    %415 = vmatprep.subr.mxu0 0.0
    %416 = vmatpush2.msra.mxu0 0.0
    %417 = vmatprep.subr.mxu0 0.0
    %418 = vmatpush2.msra.mxu0 0.0
    %419 = vmatprep.subr.mxu0 0.0
    %420 = vmatpush2.msra.mxu0 0.0
    %421 = vmatprep.subr.mxu0 0.0
    %422 = vmatpush2.msra.mxu0 0.0
    %423 = vmatprep.subr.mxu0 0.0
    %424 = vmatpush2.msra.mxu0 0.0
    %425 = vmatprep.subr.mxu0 0.0
    %426 = vmatpush2.msra.mxu0 0.0
    %427 = vmatprep.subr.mxu0 0.0
    %428 = vmatpush2.msra.mxu0 0.0
    %429 = vmatprep.subr.mxu0 0.0
    %430 = vmatpush2.msra.mxu0 0.0
    %431 = vmatprep.subr.mxu0 0.0
    %432 = vmatpush2.msra.mxu0 0.0
    %433 = vmatprep.subr.mxu0 0.0
    %434 = vmatpush2.msra.mxu0 0.0
    %435 = vmatprep.subr.mxu0 0.0
    %436 = vmatpush2.msra.mxu0 0.0
    %437 = vmatprep.subr.mxu0 0.0
    %438 = vmatpush2.msra.mxu0 0.0
    %439 = vmatprep.subr.mxu0 0.0
    %440 = vmatpush2.msra.mxu0 0.0
    %441 = vmatprep.subr.mxu0 0.0
    %442 = vmatpush2.msra.mxu0 0.0
    %443 = vmatprep.subr.mxu0 0.0
    %444 = vmatpush2.msra.mxu0 0.0
    %445 = vmatprep.mubr.f32.mxu0 0.0
    %446 = vmatmul.mubr.f32.gmra.mxu0 %v379
    %v447 = vpop.f32.mrf.mxu0
    %v448 = vadd.f32 0.0, %v447
    %v449 = vpop.f32.mrf.mxu0
    %450 = vdwg.mxu0
    %v452 = vrot.slane %v448, 2
    %v454 = vadd.f32 %v131, %v452
    %v455 = vtanh.pop %v454
    %v457 = vrot.slane %v455, 6
    %v458 = vsel %vm144, %v457, 0
    %460 = vmatprep.subr.mxu0 0.0
    %461 = vmatpush1.msra.mxu0 0.0
    %462 = vmatprep.subr.mxu0 0.0
    %463 = vmatpush1.msra.mxu0 0.0
    %464 = vmatprep.subr.mxu0 0.0
    %465 = vmatpush1.msra.mxu0 0.0
    %466 = vmatprep.subr.mxu0 0.0
    %467 = vmatpush1.msra.mxu0 0.0
    %468 = vmatprep.subr.mxu0 0.0
    %469 = vmatpush1.msra.mxu0 0.0
    %470 = vmatprep.subr.mxu0 0.0
    %471 = vmatpush1.msra.mxu0 0.0
    %472 = vmatprep.subr.mxu0 0.0
    %473 = vmatpush1.msra.mxu0 0.0
    %474 = vmatprep.subr.mxu0 0.0
    %475 = vmatpush1.msra.mxu0 0.0
    %476 = vmatprep.subr.mxu0 0.0
    %477 = vmatpush1.msra.mxu0 0.0
    %478 = vmatprep.subr.mxu0 0.0
    %479 = vmatpush1.msra.mxu0 0.0
    %480 = vmatprep.subr.mxu0 0.0
    %481 = vmatpush1.msra.mxu0 0.0
    %482 = vmatprep.subr.mxu0 0.0
    %483 = vmatpush1.msra.mxu0 0.0
    %484 = vmatprep.subr.mxu0 0.0
    %485 = vmatpush1.msra.mxu0 %v142
    %486 = vmatprep.subr.mxu0 0.0
    %487 = vmatpush1.msra.mxu0 %v141
    %488 = vmatprep.subr.mxu0 0.0
    %489 = vmatpush1.msra.mxu0 %v140
    %490 = vmatprep.subr.mxu0 0.0
    %491 = vmatpush1.msra.mxu0 %v139
    %492 = vmatprep.subr.mxu0 0.0
    %493 = vmatpush2.msra.mxu0 0.0
    %494 = vmatprep.subr.mxu0 0.0
    %495 = vmatpush2.msra.mxu0 0.0
    %496 = vmatprep.subr.mxu0 0.0
    %497 = vmatpush2.msra.mxu0 0.0
    %498 = vmatprep.subr.mxu0 0.0
    %499 = vmatpush2.msra.mxu0 0.0
    %500 = vmatprep.subr.mxu0 0.0
    %501 = vmatpush2.msra.mxu0 0.0
    %502 = vmatprep.subr.mxu0 0.0
    %503 = vmatpush2.msra.mxu0 0.0
    %504 = vmatprep.subr.mxu0 0.0
    %505 = vmatpush2.msra.mxu0 0.0
    %506 = vmatprep.subr.mxu0 0.0
    %507 = vmatpush2.msra.mxu0 0.0
    %508 = vmatprep.subr.mxu0 0.0
    %509 = vmatpush2.msra.mxu0 0.0
    %510 = vmatprep.subr.mxu0 0.0
    %511 = vmatpush2.msra.mxu0 0.0
    %512 = vmatprep.subr.mxu0 0.0
    %513 = vmatpush2.msra.mxu0 0.0
    %514 = vmatprep.subr.mxu0 0.0
    %515 = vmatpush2.msra.mxu0 0.0
    %516 = vmatprep.subr.mxu0 0.0
    %517 = vmatpush2.msra.mxu0 0.0
    %518 = vmatprep.subr.mxu0 0.0
    %519 = vmatpush2.msra.mxu0 0.0
    %520 = vmatprep.subr.mxu0 0.0
    %521 = vmatpush2.msra.mxu0 0.0
    %522 = vmatprep.subr.mxu0 0.0
    %523 = vmatpush2.msra.mxu0 0.0
    %524 = vmatprep.mubr.f32.mxu0 0.0
    %525 = vmatmul.mubr.f32.gmra.mxu0 %v458
    %v526 = vpop.f32.mrf.mxu0
    %v527 = vadd.f32 0.0, %v526
    %v528 = vpop.f32.mrf.mxu0
    %529 = vdwg.mxu0
    %v530 = vadd.f32 %v136, %v527
    %v531 = vtanh.pop %v530
    %v533 = vsel %vm144, %v531, 0
    %535 = vmatprep.subr.mxu0 0.0
    %536 = vmatpush1.msra.mxu0 0.0
    %537 = vmatprep.subr.mxu0 0.0
    %538 = vmatpush1.msra.mxu0 0.0
    %539 = vmatprep.subr.mxu0 0.0
    %540 = vmatpush1.msra.mxu0 0.0
    %541 = vmatprep.subr.mxu0 0.0
    %542 = vmatpush1.msra.mxu0 0.0
    %543 = vmatprep.subr.mxu0 0.0
    %544 = vmatpush1.msra.mxu0 0.0
    %545 = vmatprep.subr.mxu0 0.0
    %546 = vmatpush1.msra.mxu0 0.0
    %547 = vmatprep.subr.mxu0 0.0
    %548 = vmatpush1.msra.mxu0 0.0
    %549 = vmatprep.subr.mxu0 0.0
    %550 = vmatpush1.msra.mxu0 0.0
    %551 = vmatprep.subr.mxu0 0.0
    %552 = vmatpush1.msra.mxu0 0.0
    %553 = vmatprep.subr.mxu0 0.0
    %554 = vmatpush1.msra.mxu0 0.0
    %555 = vmatprep.subr.mxu0 0.0
    %556 = vmatpush1.msra.mxu0 0.0
    %557 = vmatprep.subr.mxu0 0.0
    %558 = vmatpush1.msra.mxu0 0.0
    %559 = vmatprep.subr.mxu0 0.0
    %560 = vmatpush1.msra.mxu0 %v142
    %561 = vmatprep.subr.mxu0 0.0
    %562 = vmatpush1.msra.mxu0 %v141
    %563 = vmatprep.subr.mxu0 0.0
    %564 = vmatpush1.msra.mxu0 %v140
    %565 = vmatprep.subr.mxu0 0.0
    %566 = vmatpush1.msra.mxu0 %v139
    %567 = vmatprep.subr.mxu0 0.0
    %568 = vmatpush2.msra.mxu0 0.0
    %569 = vmatprep.subr.mxu0 0.0
    %570 = vmatpush2.msra.mxu0 0.0
    %571 = vmatprep.subr.mxu0 0.0
    %572 = vmatpush2.msra.mxu0 0.0
    %573 = vmatprep.subr.mxu0 0.0
    %574 = vmatpush2.msra.mxu0 0.0
    %575 = vmatprep.subr.mxu0 0.0
    %576 = vmatpush2.msra.mxu0 0.0
    %577 = vmatprep.subr.mxu0 0.0
    %578 = vmatpush2.msra.mxu0 0.0
    %579 = vmatprep.subr.mxu0 0.0
    %580 = vmatpush2.msra.mxu0 0.0
    %581 = vmatprep.subr.mxu0 0.0
    %582 = vmatpush2.msra.mxu0 0.0
    %583 = vmatprep.subr.mxu0 0.0
    %584 = vmatpush2.msra.mxu0 0.0
    %585 = vmatprep.subr.mxu0 0.0
    %586 = vmatpush2.msra.mxu0 0.0
    %587 = vmatprep.subr.mxu0 0.0
    %588 = vmatpush2.msra.mxu0 0.0
    %589 = vmatprep.subr.mxu0 0.0
    %590 = vmatpush2.msra.mxu0 0.0
    %591 = vmatprep.subr.mxu0 0.0
    %592 = vmatpush2.msra.mxu0 0.0
    %593 = vmatprep.subr.mxu0 0.0
    %594 = vmatpush2.msra.mxu0 0.0
    %595 = vmatprep.subr.mxu0 0.0
    %596 = vmatpush2.msra.mxu0 0.0
    %597 = vmatprep.subr.mxu0 0.0
    %598 = vmatpush2.msra.mxu0 0.0
    %599 = vmatprep.mubr.f32.mxu0 0.0
    %600 = vmatmul.mubr.f32.gmra.mxu0 %v533
    %v601 = vpop.f32.mrf.mxu0
    %v602 = vadd.f32 0.0, %v601
    %v603 = vpop.f32.mrf.mxu0
    %604 = vdwg.mxu0
    %v606 = vrot.slane %v602, 6
    %v608 = vadd.f32 %v136, %v606
    %v609 = vtanh.pop %v608
    %v611 = vrot.slane %v609, 2
    %v612 = vsel %vm144, %v611, 0
    %614 = vmatprep.subr.mxu0 0.0
    %615 = vmatpush1.msra.mxu0 0.0
    %616 = vmatprep.subr.mxu0 0.0
    %617 = vmatpush1.msra.mxu0 0.0
    %618 = vmatprep.subr.mxu0 0.0
    %619 = vmatpush1.msra.mxu0 0.0
    %620 = vmatprep.subr.mxu0 0.0
    %621 = vmatpush1.msra.mxu0 0.0
    %622 = vmatprep.subr.mxu0 0.0
    %623 = vmatpush1.msra.mxu0 0.0
    %624 = vmatprep.subr.mxu0 0.0
    %625 = vmatpush1.msra.mxu0 0.0
    %626 = vmatprep.subr.mxu0 0.0
    %627 = vmatpush1.msra.mxu0 0.0
    %628 = vmatprep.subr.mxu0 0.0
    %629 = vmatpush1.msra.mxu0 0.0
    %630 = vmatprep.subr.mxu0 0.0
    %631 = vmatpush1.msra.mxu0 0.0
    %632 = vmatprep.subr.mxu0 0.0
    %633 = vmatpush1.msra.mxu0 0.0
    %634 = vmatprep.subr.mxu0 0.0
    %635 = vmatpush1.msra.mxu0 0.0
    %636 = vmatprep.subr.mxu0 0.0
    %637 = vmatpush1.msra.mxu0 0.0
    %638 = vmatprep.subr.mxu0 0.0
    %639 = vmatpush1.msra.mxu0 %v142
    %640 = vmatprep.subr.mxu0 0.0
    %641 = vmatpush1.msra.mxu0 %v141
    %642 = vmatprep.subr.mxu0 0.0
    %643 = vmatpush1.msra.mxu0 %v140
    %644 = vmatprep.subr.mxu0 0.0
    %645 = vmatpush1.msra.mxu0 %v139
    %646 = vmatprep.subr.mxu0 0.0
    %647 = vmatpush2.msra.mxu0 0.0
    %648 = vmatprep.subr.mxu0 0.0
    %649 = vmatpush2.msra.mxu0 0.0
    %650 = vmatprep.subr.mxu0 0.0
    %651 = vmatpush2.msra.mxu0 0.0
    %652 = vmatprep.subr.mxu0 0.0
    %653 = vmatpush2.msra.mxu0 0.0
    %654 = vmatprep.subr.mxu0 0.0
    %655 = vmatpush2.msra.mxu0 0.0
    %656 = vmatprep.subr.mxu0 0.0
    %657 = vmatpush2.msra.mxu0 0.0
    %658 = vmatprep.subr.mxu0 0.0
    %659 = vmatpush2.msra.mxu0 0.0
    %660 = vmatprep.subr.mxu0 0.0
    %661 = vmatpush2.msra.mxu0 0.0
    %662 = vmatprep.subr.mxu0 0.0
    %663 = vmatpush2.msra.mxu0 0.0
    %664 = vmatprep.subr.mxu0 0.0
    %665 = vmatpush2.msra.mxu0 0.0
    %666 = vmatprep.subr.mxu0 0.0
    %667 = vmatpush2.msra.mxu0 0.0
    %668 = vmatprep.subr.mxu0 0.0
    %669 = vmatpush2.msra.mxu0 0.0
    %670 = vmatprep.subr.mxu0 0.0
    %671 = vmatpush2.msra.mxu0 0.0
    %672 = vmatprep.subr.mxu0 0.0
    %673 = vmatpush2.msra.mxu0 0.0
    %674 = vmatprep.subr.mxu0 0.0
    %675 = vmatpush2.msra.mxu0 0.0
    %676 = vmatprep.subr.mxu0 0.0
    %677 = vmatpush2.msra.mxu0 0.0
    %678 = vmatprep.mubr.f32.mxu0 0.0
    %679 = vmatmul.mubr.f32.gmra.mxu0 %v612
    %v680 = vpop.f32.mrf.mxu0
    %v681 = vadd.f32 0.0, %v680
    %v682 = vpop.f32.mrf.mxu0
    %683 = vdwg.mxu0
    %v685 = vrot.slane %v681, 4
    %v687 = vadd.f32 %v136, %v685
    %v688 = vtanh.pop %v687
    %v690 = vrot.slane %v688, 4
    %v691 = vsel %vm144, %v690, 0
    %693 = vmatprep.subr.mxu0 0.0
    %694 = vmatpush1.msra.mxu0 0.0
    %695 = vmatprep.subr.mxu0 0.0
    %696 = vmatpush1.msra.mxu0 0.0
    %697 = vmatprep.subr.mxu0 0.0
    %698 = vmatpush1.msra.mxu0 0.0
    %699 = vmatprep.subr.mxu0 0.0
    %700 = vmatpush1.msra.mxu0 0.0
    %701 = vmatprep.subr.mxu0 0.0
    %702 = vmatpush1.msra.mxu0 0.0
    %703 = vmatprep.subr.mxu0 0.0
    %704 = vmatpush1.msra.mxu0 0.0
    %705 = vmatprep.subr.mxu0 0.0
    %706 = vmatpush1.msra.mxu0 0.0
    %707 = vmatprep.subr.mxu0 0.0
    %708 = vmatpush1.msra.mxu0 0.0
    %709 = vmatprep.subr.mxu0 0.0
    %710 = vmatpush1.msra.mxu0 0.0
    %711 = vmatprep.subr.mxu0 0.0
    %712 = vmatpush1.msra.mxu0 0.0
    %713 = vmatprep.subr.mxu0 0.0
    %714 = vmatpush1.msra.mxu0 0.0
    %715 = vmatprep.subr.mxu0 0.0
    %716 = vmatpush1.msra.mxu0 0.0
    %717 = vmatprep.subr.mxu0 0.0
    %718 = vmatpush1.msra.mxu0 %v142
    %719 = vmatprep.subr.mxu0 0.0
    %720 = vmatpush1.msra.mxu0 %v141
    %721 = vmatprep.subr.mxu0 0.0
    %722 = vmatpush1.msra.mxu0 %v140
    %723 = vmatprep.subr.mxu0 0.0
    %724 = vmatpush1.msra.mxu0 %v139
    %725 = vmatprep.subr.mxu0 0.0
    %726 = vmatpush2.msra.mxu0 0.0
    %727 = vmatprep.subr.mxu0 0.0
    %728 = vmatpush2.msra.mxu0 0.0
    %729 = vmatprep.subr.mxu0 0.0
    %730 = vmatpush2.msra.mxu0 0.0
    %731 = vmatprep.subr.mxu0 0.0
    %732 = vmatpush2.msra.mxu0 0.0
    %733 = vmatprep.subr.mxu0 0.0
    %734 = vmatpush2.msra.mxu0 0.0
    %735 = vmatprep.subr.mxu0 0.0
    %736 = vmatpush2.msra.mxu0 0.0
    %737 = vmatprep.subr.mxu0 0.0
    %738 = vmatpush2.msra.mxu0 0.0
    %739 = vmatprep.subr.mxu0 0.0
    %740 = vmatpush2.msra.mxu0 0.0
    %741 = vmatprep.subr.mxu0 0.0
    %742 = vmatpush2.msra.mxu0 0.0
    %743 = vmatprep.subr.mxu0 0.0
    %744 = vmatpush2.msra.mxu0 0.0
    %745 = vmatprep.subr.mxu0 0.0
    %746 = vmatpush2.msra.mxu0 0.0
    %747 = vmatprep.subr.mxu0 0.0
    %748 = vmatpush2.msra.mxu0 0.0
    %749 = vmatprep.subr.mxu0 0.0
    %750 = vmatpush2.msra.mxu0 0.0
    %751 = vmatprep.subr.mxu0 0.0
    %752 = vmatpush2.msra.mxu0 0.0
    %753 = vmatprep.subr.mxu0 0.0
    %754 = vmatpush2.msra.mxu0 0.0
    %755 = vmatprep.subr.mxu0 0.0
    %756 = vmatpush2.msra.mxu0 0.0
    %757 = vmatprep.mubr.f32.mxu0 0.0
    %758 = vmatmul.mubr.f32.gmra.mxu0 %v691
    %v759 = vpop.f32.mrf.mxu0
    %v760 = vadd.f32 0.0, %v759
    %v761 = vpop.f32.mrf.mxu0
    %762 = vdwg.mxu0
    %v764 = vrot.slane %v760, 2
    %v766 = vadd.f32 %v136, %v764
    %v767 = vtanh.pop %v766
    %vm768 = vcmask 1041408
    %v769 = vsel %vm768, %v219, %v297
    %v770 = vsel %vm60, %v769, %v376
    %vm771 = vcmask 1045504
    %v772 = vsel %vm771, %v770, %v455
    %v773 = vsel %vm768, %v531, %v609
    %v774 = vsel %vm60, %v773, %v688
    %v775 = vsel %vm771, %v774, %v767
    %v776 = vld [vmem:[%s5] sm:$0x1]
    %v777 = vld [vmem:[#allocation2] sm:$0x1]
    %779 = vset.pattern.permute.xlu0 0
    %780 = vperm.xlu0 %779, %v777
    %v781 = vpop.permute.xlu0 %780
    %v783 = vlaneseq
    %v784 = vshrl.u32 %v783, 7
    %v785 = vsub.s32 0, %v784
    %v786 = vrot.slane %v781, %v785
    %v788 = vsel %vm144, %v776, 0
    %v791 = vsel %vm144, %v772, 0
    %v794 = vsel %vm144, %v775, 0
    %796 = vmatprep.subr.mxu0 0.0
    %797 = vmatpush1.xpose.msra.mxu0 0.0
    %798 = vmatprep.subr.mxu0 0.0
    %799 = vmatpush1.xpose.msra.mxu0 0.0
    %800 = vmatprep.subr.mxu0 0.0
    %801 = vmatpush1.xpose.msra.mxu0 0.0
    %802 = vmatprep.subr.mxu0 0.0
    %803 = vmatpush1.xpose.msra.mxu0 0.0
    %804 = vmatprep.subr.mxu0 0.0
    %805 = vmatpush1.xpose.msra.mxu0 0.0
    %806 = vmatprep.subr.mxu0 0.0
    %807 = vmatpush1.xpose.msra.mxu0 0.0
    %808 = vmatprep.subr.mxu0 0.0
    %809 = vmatpush1.xpose.msra.mxu0 0.0
    %810 = vmatprep.subr.mxu0 0.0
    %811 = vmatpush1.xpose.msra.mxu0 0.0
    %812 = vmatprep.subr.mxu0 0.0
    %813 = vmatpush1.xpose.msra.mxu0 0.0
    %814 = vmatprep.subr.mxu0 0.0
    %815 = vmatpush1.xpose.msra.mxu0 0.0
    %816 = vmatprep.subr.mxu0 0.0
    %817 = vmatpush1.xpose.msra.mxu0 0.0
    %818 = vmatprep.subr.mxu0 0.0
    %819 = vmatpush1.xpose.msra.mxu0 0.0
    %820 = vmatprep.subr.mxu0 0.0
    %821 = vmatpush1.xpose.msra.mxu0 0.0
    %822 = vmatprep.subr.mxu0 0.0
    %823 = vmatpush1.xpose.msra.mxu0 0.0
    %824 = vmatprep.subr.mxu0 0.0
    %825 = vmatpush1.xpose.msra.mxu0 %v794
    %826 = vmatprep.subr.mxu0 0.0
    %827 = vmatpush1.xpose.msra.mxu0 %v791
    %828 = vmatprep.subr.mxu0 0.0
    %829 = vmatpush2.xpose.msra.mxu0 0.0
    %830 = vmatprep.subr.mxu0 0.0
    %831 = vmatpush2.xpose.msra.mxu0 0.0
    %832 = vmatprep.subr.mxu0 0.0
    %833 = vmatpush2.xpose.msra.mxu0 0.0
    %834 = vmatprep.subr.mxu0 0.0
    %835 = vmatpush2.xpose.msra.mxu0 0.0
    %836 = vmatprep.subr.mxu0 0.0
    %837 = vmatpush2.xpose.msra.mxu0 0.0
    %838 = vmatprep.subr.mxu0 0.0
    %839 = vmatpush2.xpose.msra.mxu0 0.0
    %840 = vmatprep.subr.mxu0 0.0
    %841 = vmatpush2.xpose.msra.mxu0 0.0
    %842 = vmatprep.subr.mxu0 0.0
    %843 = vmatpush2.xpose.msra.mxu0 0.0
    %844 = vmatprep.subr.mxu0 0.0
    %845 = vmatpush2.xpose.msra.mxu0 0.0
    %846 = vmatprep.subr.mxu0 0.0
    %847 = vmatpush2.xpose.msra.mxu0 0.0
    %848 = vmatprep.subr.mxu0 0.0
    %849 = vmatpush2.xpose.msra.mxu0 0.0
    %850 = vmatprep.subr.mxu0 0.0
    %851 = vmatpush2.xpose.msra.mxu0 0.0
    %852 = vmatprep.subr.mxu0 0.0
    %853 = vmatpush2.xpose.msra.mxu0 0.0
    %854 = vmatprep.subr.mxu0 0.0
    %855 = vmatpush2.xpose.msra.mxu0 0.0
    %856 = vmatprep.subr.mxu0 0.0
    %857 = vmatpush2.xpose.msra.mxu0 0.0
    %858 = vmatprep.subr.mxu0 0.0
    %859 = vmatpush2.xpose.msra.mxu0 0.0
    %860 = vmatprep.mubr.f32.mxu0 0.0
    %861 = vmatmul.mubr.f32.gmra.mxu0 %v788
    %v862 = vpop.f32.mrf.mxu0
    %v863 = vadd.f32 %v786, %v862
    %v864 = vpop.f32.mrf.mxu0
    %865 = vdwg.mxu0
    %vm866 = vcmask 122880
    %867 = vst.msk [vmem:[#allocation6] sm:$0x1] %vm866, %v863
    // Predicated region
    $region34: #{rnn_only_forward.1} parent=1 // pred_check
      _
    $region35: #{rnn_only_forward.1} parent=1 // pred_check_branch
      %869 = sbr.rel (0) target = $region37
    $region36: #{rnn_only_forward.1} parent=1 // pred_region
      %s871 = ssub.s32 16, 16
      %872 = vsyncadd [#allocation5], %s871
      %s874 = sshll.u32 [#allocation6], 4
      %s875 = int_to_ptr.vmem [resolvable:$true] %s874
      %877 = dma.vmem_to_hbm [thread:$0]  %s875, 16, %s7, [#allocation5]
    $region37: #{rnn_only_forward.1} parent=1 // pred_fallthru
      _
    // Predicated region
    $region38: #{rnn_only_forward.1} parent=1 // pred_check
      _
    $region39: #{rnn_only_forward.1} parent=1 // pred_check_branch
      %879 = sbr.rel (0) target = $region41
    $region40: #{rnn_only_forward.1} parent=1 // pred_region
      %880 = dma.done [#allocation5], 16
    $region41: #{rnn_only_forward.1} parent=1 // pred_fallthru
      _
    %881 = vsyncpa [#allocation4], 1
    %882 = vsyncpa [#allocation5], 1

</llo_original>
